<compile_context>
chip_gen: v7x
topology: tpu7x:2x2x1
jax: 0.10.0
libtpu: 0.0.40
codegen_flags: <defaults>
</compile_context>

<pallas_src>
import functools

import jax
import jax.numpy as jnp
from jax.experimental import pallas as pl
from jax.experimental.pallas import tpu as pltpu


def _round_up(x, m):
    return ((x + m - 1) // m) * m


def _interaction_kernel(a_ref, bt_ref, w2_ref, b2_ref, out_ref, *, chunk_m, chunk_n):
    """Compute one (TM, TN) tile of the score matrix in (chunk_m, chunk_n) sub-tiles.

    a_ref  : (TM, H)  VMEM   row-side projection  A[m, h] = x[m] @ W1a^T + b1
    bt_ref : (H, TN)  VMEM   col-side projection  B^T[h, n] = x[n] @ W1b^T
    w2_ref : (H,)     SMEM   final-layer weight
    b2_ref : (1,)     SMEM   final-layer bias
    out_ref: (TM, TN) VMEM   scores tile (f32)
    """
    tm, tn = out_ref.shape
    hidden = a_ref.shape[-1]

    for m0 in range(0, tm, chunk_m):
        ms = min(chunk_m, tm - m0)
        for n0 in range(0, tn, chunk_n):
            ns = min(chunk_n, tn - n0)
            # Small accumulator: (128, 128) f32 = 16 vregs -> no register spills.
            acc = jnp.full((ms, ns), b2_ref[0], dtype=jnp.float32)

            if hidden <= 128:
                # Full unroll (cheap at H ~ 32, gives the LLO scheduler visibility).
                for h in range(hidden):
                    a_col = a_ref[m0:m0 + ms, h:h + 1]      # (ms, 1) -> lane bcast
                    b_row = bt_ref[h:h + 1, n0:n0 + ns]     # (1, ns) -> sublane bcast
                    # add/relu in compute dtype (f32 or bf16); scale+accumulate in f32.
                    acc = acc + w2_ref[h] * jnp.maximum(a_col + b_row, 0.0)
            else:
                # Large-H guard: rolled loop with modest unroll to bound code size.
                def body(h, acc):
                    a_col = a_ref[m0:m0 + ms, pl.ds(h, 1)]
                    b_row = bt_ref[pl.ds(h, 1), n0:n0 + ns]
                    return acc + w2_ref[h] * jnp.maximum(a_col + b_row, 0.0)

                acc = jax.lax.fori_loop(0, hidden, body, acc, unroll=4)

            # One lane-dense store per sub-tile.
            out_ref[m0:m0 + ms, n0:n0 + ns] = acc.astype(out_ref.dtype)


@functools.partial(
    jax.jit,
    static_argnames=("tile_m", "tile_n", "chunk_m", "chunk_n", "compute_dtype"))
def interaction_predictor(node_embeddings, w1, b1, w2, b2, *,
                          tile_m=256, tile_n=1024, chunk_m=128, chunk_n=128,
                          compute_dtype=jnp.float32):
    """node_embeddings: (N, H) f32. w1: (H, 2H), b1: (H,), w2: (1, H), b2: (1,)."""
    n, hidden = node_embeddings.shape

    # Hoisted projections: one fused matmul  x @ [W1a^T | W1b^T]  -> (N, 2H), in f32.
    w_cat = jnp.concatenate(
        [jnp.transpose(w1[:, :hidden]), jnp.transpose(w1[:, hidden:])], axis=1)
    proj = jnp.dot(node_embeddings.astype(jnp.float32), w_cat.astype(jnp.float32),
                   preferred_element_type=jnp.float32)
    a = (proj[:, :hidden] + b1[None, :]).astype(compute_dtype)   # (N, H)
    bt = jnp.transpose(proj[:, hidden:]).astype(compute_dtype)   # (H, N) node axis on lanes

    # Tile sizing: rows only need sublane (8) granularity; columns need lane (128)
    # granularity.  If N fits in one row block, use round_up(N, 8) to minimize padding.
    tm = min(tile_m, _round_up(n, 8))
    tn = min(tile_n, _round_up(n, 128))
    np_r = _round_up(n, tm)
    np_c = _round_up(n, tn)

    a_p = jnp.pad(a, ((0, np_r - n), (0, 0)))
    bt_p = jnp.pad(bt, ((0, 0), (0, np_c - n)))
    w2_vec = w2.reshape(-1).astype(jnp.float32)   # (H,)  -> SMEM
    b2_vec = b2.reshape(-1).astype(jnp.float32)   # (1,)  -> SMEM

    grid = (np_r // tm, np_c // tn)

    kernel = functools.partial(_interaction_kernel, chunk_m=chunk_m, chunk_n=chunk_n)

    out = pl.pallas_call(
        kernel,
        out_shape=jax.ShapeDtypeStruct((np_r, np_c), jnp.float32),
        grid_spec=pltpu.PrefetchScalarGridSpec(
            num_scalar_prefetch=0,
            grid=grid,
            in_specs=[
                pl.BlockSpec((tm, hidden), lambda i, j: (i, 0)),      # A row tile
                pl.BlockSpec((hidden, tn), lambda i, j: (0, j)),      # B^T column tile
                pl.BlockSpec(memory_space=pltpu.MemorySpace.SMEM),    # w2
                pl.BlockSpec(memory_space=pltpu.MemorySpace.SMEM),    # b2
            ],
            out_specs=pl.BlockSpec((tm, tn), lambda i, j: (i, j)),
        ),
        compiler_params=pltpu.CompilerParams(
            dimension_semantics=("parallel", "parallel")),
    )(a_p, bt_p, w2_vec, b2_vec)

    # Slice away padded rows/cols (no-op when N is already tile-aligned).
    return out[:n, :n]


def _reference(node_embeddings, w1, b1, w2, b2):
    n = node_embeddings.shape[0]
    node_i = jnp.repeat(node_embeddings[:, None, :], n, axis=1)
    node_j = jnp.repeat(node_embeddings[None, :, :], n, axis=0)
    pairs = jnp.concatenate([node_i, node_j], axis=-1)
    h = jax.nn.relu(pairs @ w1.T + b1)
    return (h @ w2.T + b2)[..., 0]


if __name__ == "__main__":
    hidden_channels = 32
    num_nodes = 8

    key = jax.random.PRNGKey(0)
    kx, kw1, kb1, kw2, kb2, kx2 = jax.random.split(key, 6)

    # Deterministic init matching nn.Linear's uniform(-1/sqrt(fan_in), 1/sqrt(fan_in)).
    fan1 = 2 * hidden_channels
    lim1 = 1.0 / (fan1 ** 0.5)
    w1 = jax.random.uniform(kw1, (hidden_channels, fan1), jnp.float32, -lim1, lim1)
    b1 = jax.random.uniform(kb1, (hidden_channels,), jnp.float32, -lim1, lim1)
    lim2 = 1.0 / (hidden_channels ** 0.5)
    w2 = jax.random.uniform(kw2, (1, hidden_channels), jnp.float32, -lim2, lim2)
    b2 = jax.random.uniform(kb2, (1,), jnp.float32, -lim2, lim2)

    # --- Small test (matches the module's forward shapes) --------------------------
    node_embeddings = jax.random.normal(kx, (num_nodes, hidden_channels), jnp.float32)
    scores = jax.block_until_ready(
        interaction_predictor(node_embeddings, w1, b1, w2, b2))
    ref = _reference(node_embeddings, w1, b1, w2, b2)
    assert scores.shape == (num_nodes, num_nodes)
    assert jnp.allclose(scores, ref, atol=1e-4, rtol=1e-4), "mismatch vs reference (N=8)"

    # --- Larger test: multi-chunk inner loop + row/column padding ------------------
    n_big = 200  # not tile-aligned -> exercises padding + slicing + ragged row chunk
    x_big = jax.random.normal(kx2, (n_big, hidden_channels), jnp.float32)
    ref_big = _reference(x_big, w1, b1, w2, b2)

    scores_big = jax.block_until_ready(interaction_predictor(x_big, w1, b1, w2, b2))
    assert jnp.allclose(scores_big, ref_big, atol=1e-4, rtol=1e-4), \
        "mismatch vs reference (N=200, default tiles)"

    # Force both grid axes > 1 with small tiles.
    scores_tiled = jax.block_until_ready(
        interaction_predictor(x_big, w1, b1, w2, b2, tile_m=64, tile_n=128))
    assert jnp.allclose(scores_tiled, ref_big, atol=1e-4, rtol=1e-4), \
        "mismatch vs reference (N=200, tiled grid)"

    # Packed-bf16 compute path (v6e/v7x optimization); accumulation stays f32.
    scores_bf16 = jax.block_until_ready(
        interaction_predictor(x_big, w1, b1, w2, b2, compute_dtype=jnp.bfloat16))
    assert jnp.allclose(scores_bf16, ref_big, atol=3e-2, rtol=3e-2), \
        "mismatch vs reference (N=200, bf16 compute)"

    print("KERNEL_OK")
</pallas_src>

<mosaic_0001>
module attributes {stable_mosaic.version = 11 : i64} {
  func.func @_interaction_kernel(%arg0: i32, %arg1: i32, %arg2: memref<8x32xf32, #tpu.memory_space<vmem>>, %arg3: memref<32x128xf32, #tpu.memory_space<vmem>>, %arg4: memref<32xf32, #tpu.memory_space<smem>>, %arg5: memref<1xf32, #tpu.memory_space<smem>>, %arg6: memref<8x128xf32, #tpu.memory_space<vmem>>) attributes {dimension_semantics = [#tpu.dimension_semantics<parallel>, #tpu.dimension_semantics<parallel>], iteration_bounds = array<i64: 1, 1>, scalar_prefetch = 0 : i64, scratch_operands = 0 : i64, tpu.core_type = #tpu.core_type<tc>, window_params = [{transform_indices = @transform_0, window_bounds = array<i64: 8, 32>}, {transform_indices = @transform_1, window_bounds = array<i64: 32, 128>}, {transform_indices = @transform_2, window_bounds = array<i64: 32>}, {transform_indices = @transform_3, window_bounds = array<i64: 1>}, {transform_indices = @transform_4, window_bounds = array<i64: 8, 128>}]} {
    %c0 = arith.constant 0 : index
    %0 = memref.load %arg5[%c0] : memref<1xf32, #tpu.memory_space<smem>>
    %1 = vector.broadcast %0 : f32 to vector<8x128xf32>
    %c0_0 = arith.constant 0 : index
    %c0_1 = arith.constant 0 : index
    %2 = vector.load %arg2[%c0_0, %c0_1] : memref<8x32xf32, #tpu.memory_space<vmem>>, vector<8x1xf32>
    %c0_2 = arith.constant 0 : index
    %c0_3 = arith.constant 0 : index
    %3 = vector.load %arg3[%c0_2, %c0_3] : memref<32x128xf32, #tpu.memory_space<vmem>>, vector<1x128xf32>
    %c0_4 = arith.constant 0 : index
    %4 = memref.load %arg4[%c0_4] : memref<32xf32, #tpu.memory_space<smem>>
    %5 = vector.broadcast %2 : vector<8x1xf32> to vector<8x128xf32>
    %6 = vector.broadcast %3 : vector<1x128xf32> to vector<8x128xf32>
    %7 = arith.addf %5, %6 : vector<8x128xf32>
    %cst = arith.constant 0.000000e+00 : f32
    %8 = vector.broadcast %cst : f32 to vector<8x128xf32>
    %9 = arith.maximumf %7, %8 : vector<8x128xf32>
    %10 = vector.broadcast %4 : f32 to vector<8x128xf32>
    %11 = arith.mulf %10, %9 : vector<8x128xf32>
    %12 = arith.addf %1, %11 : vector<8x128xf32>
    %c0_5 = arith.constant 0 : index
    %c1 = arith.constant 1 : index
    %13 = vector.load %arg2[%c0_5, %c1] : memref<8x32xf32, #tpu.memory_space<vmem>>, vector<8x1xf32>
    %c1_6 = arith.constant 1 : index
    %c0_7 = arith.constant 0 : index
    %14 = vector.load %arg3[%c1_6, %c0_7] : memref<32x128xf32, #tpu.memory_space<vmem>>, vector<1x128xf32>
    %c1_8 = arith.constant 1 : index
    %15 = memref.load %arg4[%c1_8] : memref<32xf32, #tpu.memory_space<smem>>
    %16 = vector.broadcast %13 : vector<8x1xf32> to vector<8x128xf32>
    %17 = vector.broadcast %14 : vector<1x128xf32> to vector<8x128xf32>
    %18 = arith.addf %16, %17 : vector<8x128xf32>
    %cst_9 = arith.constant 0.000000e+00 : f32
    %19 = vector.broadcast %cst_9 : f32 to vector<8x128xf32>
    %20 = arith.maximumf %18, %19 : vector<8x128xf32>
    %21 = vector.broadcast %15 : f32 to vector<8x128xf32>
    %22 = arith.mulf %21, %20 : vector<8x128xf32>
    %23 = arith.addf %12, %22 : vector<8x128xf32>
    %c0_10 = arith.constant 0 : index
    %c2 = arith.constant 2 : index
    %24 = vector.load %arg2[%c0_10, %c2] : memref<8x32xf32, #tpu.memory_space<vmem>>, vector<8x1xf32>
    %c2_11 = arith.constant 2 : index
    %c0_12 = arith.constant 0 : index
    %25 = vector.load %arg3[%c2_11, %c0_12] : memref<32x128xf32, #tpu.memory_space<vmem>>, vector<1x128xf32>
    %c2_13 = arith.constant 2 : index
    %26 = memref.load %arg4[%c2_13] : memref<32xf32, #tpu.memory_space<smem>>
    %27 = vector.broadcast %24 : vector<8x1xf32> to vector<8x128xf32>
    %28 = vector.broadcast %25 : vector<1x128xf32> to vector<8x128xf32>
    %29 = arith.addf %27, %28 : vector<8x128xf32>
    %cst_14 = arith.constant 0.000000e+00 : f32
    %30 = vector.broadcast %cst_14 : f32 to vector<8x128xf32>
    %31 = arith.maximumf %29, %30 : vector<8x128xf32>
    %32 = vector.broadcast %26 : f32 to vector<8x128xf32>
    %33 = arith.mulf %32, %31 : vector<8x128xf32>
    %34 = arith.addf %23, %33 : vector<8x128xf32>
    %c0_15 = arith.constant 0 : index
    %c3 = arith.constant 3 : index
    %35 = vector.load %arg2[%c0_15, %c3] : memref<8x32xf32, #tpu.memory_space<vmem>>, vector<8x1xf32>
    %c3_16 = arith.constant 3 : index
    %c0_17 = arith.constant 0 : index
    %36 = vector.load %arg3[%c3_16, %c0_17] : memref<32x128xf32, #tpu.memory_space<vmem>>, vector<1x128xf32>
    %c3_18 = arith.constant 3 : index
    %37 = memref.load %arg4[%c3_18] : memref<32xf32, #tpu.memory_space<smem>>
    %38 = vector.broadcast %35 : vector<8x1xf32> to vector<8x128xf32>
    %39 = vector.broadcast %36 : vector<1x128xf32> to vector<8x128xf32>
    %40 = arith.addf %38, %39 : vector<8x128xf32>
    %cst_19 = arith.constant 0.000000e+00 : f32
    %41 = vector.broadcast %cst_19 : f32 to vector<8x128xf32>
    %42 = arith.maximumf %40, %41 : vector<8x128xf32>
    %43 = vector.broadcast %37 : f32 to vector<8x128xf32>
    %44 = arith.mulf %43, %42 : vector<8x128xf32>
    %45 = arith.addf %34, %44 : vector<8x128xf32>
    %c0_20 = arith.constant 0 : index
    %c4 = arith.constant 4 : index
    %46 = vector.load %arg2[%c0_20, %c4] : memref<8x32xf32, #tpu.memory_space<vmem>>, vector<8x1xf32>
    %c4_21 = arith.constant 4 : index
    %c0_22 = arith.constant 0 : index
    %47 = vector.load %arg3[%c4_21, %c0_22] : memref<32x128xf32, #tpu.memory_space<vmem>>, vector<1x128xf32>
    %c4_23 = arith.constant 4 : index
    %48 = memref.load %arg4[%c4_23] : memref<32xf32, #tpu.memory_space<smem>>
    %49 = vector.broadcast %46 : vector<8x1xf32> to vector<8x128xf32>
    %50 = vector.broadcast %47 : vector<1x128xf32> to vector<8x128xf32>
    %51 = arith.addf %49, %50 : vector<8x128xf32>
    %cst_24 = arith.constant 0.000000e+00 : f32
    %52 = vector.broadcast %cst_24 : f32 to vector<8x128xf32>
    %53 = arith.maximumf %51, %52 : vector<8x128xf32>
    %54 = vector.broadcast %48 : f32 to vector<8x128xf32>
    %55 = arith.mulf %54, %53 : vector<8x128xf32>
    %56 = arith.addf %45, %55 : vector<8x128xf32>
    %c0_25 = arith.constant 0 : index
    %c5 = arith.constant 5 : index
    %57 = vector.load %arg2[%c0_25, %c5] : memref<8x32xf32, #tpu.memory_space<vmem>>, vector<8x1xf32>
    %c5_26 = arith.constant 5 : index
    %c0_27 = arith.constant 0 : index
    %58 = vector.load %arg3[%c5_26, %c0_27] : memref<32x128xf32, #tpu.memory_space<vmem>>, vector<1x128xf32>
    %c5_28 = arith.constant 5 : index
    %59 = memref.load %arg4[%c5_28] : memref<32xf32, #tpu.memory_space<smem>>
    %60 = vector.broadcast %57 : vector<8x1xf32> to vector<8x128xf32>
    %61 = vector.broadcast %58 : vector<1x128xf32> to vector<8x128xf32>
    %62 = arith.addf %60, %61 : vector<8x128xf32>
    %cst_29 = arith.constant 0.000000e+00 : f32
    %63 = vector.broadcast %cst_29 : f32 to vector<8x128xf32>
    %64 = arith.maximumf %62, %63 : vector<8x128xf32>
    %65 = vector.broadcast %59 : f32 to vector<8x128xf32>
    %66 = arith.mulf %65, %64 : vector<8x128xf32>
    %67 = arith.addf %56, %66 : vector<8x128xf32>
    %c0_30 = arith.constant 0 : index
    %c6 = arith.constant 6 : index
    %68 = vector.load %arg2[%c0_30, %c6] : memref<8x32xf32, #tpu.memory_space<vmem>>, vector<8x1xf32>
    %c6_31 = arith.constant 6 : index
    %c0_32 = arith.constant 0 : index
    %69 = vector.load %arg3[%c6_31, %c0_32] : memref<32x128xf32, #tpu.memory_space<vmem>>, vector<1x128xf32>
    %c6_33 = arith.constant 6 : index
    %70 = memref.load %arg4[%c6_33] : memref<32xf32, #tpu.memory_space<smem>>
    %71 = vector.broadcast %68 : vector<8x1xf32> to vector<8x128xf32>
    %72 = vector.broadcast %69 : vector<1x128xf32> to vector<8x128xf32>
    %73 = arith.addf %71, %72 : vector<8x128xf32>
    %cst_34 = arith.constant 0.000000e+00 : f32
    %74 = vector.broadcast %cst_34 : f32 to vector<8x128xf32>
    %75 = arith.maximumf %73, %74 : vector<8x128xf32>
    %76 = vector.broadcast %70 : f32 to vector<8x128xf32>
    %77 = arith.mulf %76, %75 : vector<8x128xf32>
    %78 = arith.addf %67, %77 : vector<8x128xf32>
    %c0_35 = arith.constant 0 : index
    %c7 = arith.constant 7 : index
    %79 = vector.load %arg2[%c0_35, %c7] : memref<8x32xf32, #tpu.memory_space<vmem>>, vector<8x1xf32>
    %c7_36 = arith.constant 7 : index
    %c0_37 = arith.constant 0 : index
    %80 = vector.load %arg3[%c7_36, %c0_37] : memref<32x128xf32, #tpu.memory_space<vmem>>, vector<1x128xf32>
    %c7_38 = arith.constant 7 : index
    %81 = memref.load %arg4[%c7_38] : memref<32xf32, #tpu.memory_space<smem>>
    %82 = vector.broadcast %79 : vector<8x1xf32> to vector<8x128xf32>
    %83 = vector.broadcast %80 : vector<1x128xf32> to vector<8x128xf32>
    %84 = arith.addf %82, %83 : vector<8x128xf32>
    %cst_39 = arith.constant 0.000000e+00 : f32
    %85 = vector.broadcast %cst_39 : f32 to vector<8x128xf32>
    %86 = arith.maximumf %84, %85 : vector<8x128xf32>
    %87 = vector.broadcast %81 : f32 to vector<8x128xf32>
    %88 = arith.mulf %87, %86 : vector<8x128xf32>
    %89 = arith.addf %78, %88 : vector<8x128xf32>
    %c0_40 = arith.constant 0 : index
    %c8 = arith.constant 8 : index
    %90 = vector.load %arg2[%c0_40, %c8] : memref<8x32xf32, #tpu.memory_space<vmem>>, vector<8x1xf32>
    %c8_41 = arith.constant 8 : index
    %c0_42 = arith.constant 0 : index
    %91 = vector.load %arg3[%c8_41, %c0_42] : memref<32x128xf32, #tpu.memory_space<vmem>>, vector<1x128xf32>
    %c8_43 = arith.constant 8 : index
    %92 = memref.load %arg4[%c8_43] : memref<32xf32, #tpu.memory_space<smem>>
    %93 = vector.broadcast %90 : vector<8x1xf32> to vector<8x128xf32>
    %94 = vector.broadcast %91 : vector<1x128xf32> to vector<8x128xf32>
    %95 = arith.addf %93, %94 : vector<8x128xf32>
    %cst_44 = arith.constant 0.000000e+00 : f32
    %96 = vector.broadcast %cst_44 : f32 to vector<8x128xf32>
    %97 = arith.maximumf %95, %96 : vector<8x128xf32>
    %98 = vector.broadcast %92 : f32 to vector<8x128xf32>
    %99 = arith.mulf %98, %97 : vector<8x128xf32>
    %100 = arith.addf %89, %99 : vector<8x128xf32>
    %c0_45 = arith.constant 0 : index
    %c9 = arith.constant 9 : index
    %101 = vector.load %arg2[%c0_45, %c9] : memref<8x32xf32, #tpu.memory_space<vmem>>, vector<8x1xf32>
    %c9_46 = arith.constant 9 : index
    %c0_47 = arith.constant 0 : index
    %102 = vector.load %arg3[%c9_46, %c0_47] : memref<32x128xf32, #tpu.memory_space<vmem>>, vector<1x128xf32>
    %c9_48 = arith.constant 9 : index
    %103 = memref.load %arg4[%c9_48] : memref<32xf32, #tpu.memory_space<smem>>
    %104 = vector.broadcast %101 : vector<8x1xf32> to vector<8x128xf32>
    %105 = vector.broadcast %102 : vector<1x128xf32> to vector<8x128xf32>
    %106 = arith.addf %104, %105 : vector<8x128xf32>
    %cst_49 = arith.constant 0.000000e+00 : f32
    %107 = vector.broadcast %cst_49 : f32 to vector<8x128xf32>
    %108 = arith.maximumf %106, %107 : vector<8x128xf32>
    %109 = vector.broadcast %103 : f32 to vector<8x128xf32>
    %110 = arith.mulf %109, %108 : vector<8x128xf32>
    %111 = arith.addf %100, %110 : vector<8x128xf32>
    %c0_50 = arith.constant 0 : index
    %c10 = arith.constant 10 : index
    %112 = vector.load %arg2[%c0_50, %c10] : memref<8x32xf32, #tpu.memory_space<vmem>>, vector<8x1xf32>
    %c10_51 = arith.constant 10 : index
    %c0_52 = arith.constant 0 : index
    %113 = vector.load %arg3[%c10_51, %c0_52] : memref<32x128xf32, #tpu.memory_space<vmem>>, vector<1x128xf32>
    %c10_53 = arith.constant 10 : index
    %114 = memref.load %arg4[%c10_53] : memref<32xf32, #tpu.memory_space<smem>>
    %115 = vector.broadcast %112 : vector<8x1xf32> to vector<8x128xf32>
    %116 = vector.broadcast %113 : vector<1x128xf32> to vector<8x128xf32>
    %117 = arith.addf %115, %116 : vector<8x128xf32>
    %cst_54 = arith.constant 0.000000e+00 : f32
    %118 = vector.broadcast %cst_54 : f32 to vector<8x128xf32>
    %119 = arith.maximumf %117, %118 : vector<8x128xf32>
    %120 = vector.broadcast %114 : f32 to vector<8x128xf32>
    %121 = arith.mulf %120, %119 : vector<8x128xf32>
    %122 = arith.addf %111, %121 : vector<8x128xf32>
    %c0_55 = arith.constant 0 : index
    %c11 = arith.constant 11 : index
    %123 = vector.load %arg2[%c0_55, %c11] : memref<8x32xf32, #tpu.memory_space<vmem>>, vector<8x1xf32>
    %c11_56 = arith.constant 11 : index
    %c0_57 = arith.constant 0 : index
    %124 = vector.load %arg3[%c11_56, %c0_57] : memref<32x128xf32, #tpu.memory_space<vmem>>, vector<1x128xf32>
    %c11_58 = arith.constant 11 : index
    %125 = memref.load %arg4[%c11_58] : memref<32xf32, #tpu.memory_space<smem>>
    %126 = vector.broadcast %123 : vector<8x1xf32> to vector<8x128xf32>
    %127 = vector.broadcast %124 : vector<1x128xf32> to vector<8x128xf32>
    %128 = arith.addf %126, %127 : vector<8x128xf32>
    %cst_59 = arith.constant 0.000000e+00 : f32
    %129 = vector.broadcast %cst_59 : f32 to vector<8x128xf32>
    %130 = arith.maximumf %128, %129 : vector<8x128xf32>
    %131 = vector.broadcast %125 : f32 to vector<8x128xf32>
    %132 = arith.mulf %131, %130 : vector<8x128xf32>
    %133 = arith.addf %122, %132 : vector<8x128xf32>
    %c0_60 = arith.constant 0 : index
    %c12 = arith.constant 12 : index
    %134 = vector.load %arg2[%c0_60, %c12] : memref<8x32xf32, #tpu.memory_space<vmem>>, vector<8x1xf32>
    %c12_61 = arith.constant 12 : index
    %c0_62 = arith.constant 0 : index
    %135 = vector.load %arg3[%c12_61, %c0_62] : memref<32x128xf32, #tpu.memory_space<vmem>>, vector<1x128xf32>
    %c12_63 = arith.constant 12 : index
    %136 = memref.load %arg4[%c12_63] : memref<32xf32, #tpu.memory_space<smem>>
    %137 = vector.broadcast %134 : vector<8x1xf32> to vector<8x128xf32>
    %138 = vector.broadcast %135 : vector<1x128xf32> to vector<8x128xf32>
    %139 = arith.addf %137, %138 : vector<8x128xf32>
    %cst_64 = arith.constant 0.000000e+00 : f32
    %140 = vector.broadcast %cst_64 : f32 to vector<8x128xf32>
    %141 = arith.maximumf %139, %140 : vector<8x128xf32>
    %142 = vector.broadcast %136 : f32 to vector<8x128xf32>
    %143 = arith.mulf %142, %141 : vector<8x128xf32>
    %144 = arith.addf %133, %143 : vector<8x128xf32>
    %c0_65 = arith.constant 0 : index
    %c13 = arith.constant 13 : index
    %145 = vector.load %arg2[%c0_65, %c13] : memref<8x32xf32, #tpu.memory_space<vmem>>, vector<8x1xf32>
    %c13_66 = arith.constant 13 : index
    %c0_67 = arith.constant 0 : index
    %146 = vector.load %arg3[%c13_66, %c0_67] : memref<32x128xf32, #tpu.memory_space<vmem>>, vector<1x128xf32>
    %c13_68 = arith.constant 13 : index
    %147 = memref.load %arg4[%c13_68] : memref<32xf32, #tpu.memory_space<smem>>
    %148 = vector.broadcast %145 : vector<8x1xf32> to vector<8x128xf32>
    %149 = vector.broadcast %146 : vector<1x128xf32> to vector<8x128xf32>
    %150 = arith.addf %148, %149 : vector<8x128xf32>
    %cst_69 = arith.constant 0.000000e+00 : f32
    %151 = vector.broadcast %cst_69 : f32 to vector<8x128xf32>
    %152 = arith.maximumf %150, %151 : vector<8x128xf32>
    %153 = vector.broadcast %147 : f32 to vector<8x128xf32>
    %154 = arith.mulf %153, %152 : vector<8x128xf32>
    %155 = arith.addf %144, %154 : vector<8x128xf32>
    %c0_70 = arith.constant 0 : index
    %c14 = arith.constant 14 : index
    %156 = vector.load %arg2[%c0_70, %c14] : memref<8x32xf32, #tpu.memory_space<vmem>>, vector<8x1xf32>
    %c14_71 = arith.constant 14 : index
    %c0_72 = arith.constant 0 : index
    %157 = vector.load %arg3[%c14_71, %c0_72] : memref<32x128xf32, #tpu.memory_space<vmem>>, vector<1x128xf32>
    %c14_73 = arith.constant 14 : index
    %158 = memref.load %arg4[%c14_73] : memref<32xf32, #tpu.memory_space<smem>>
    %159 = vector.broadcast %156 : vector<8x1xf32> to vector<8x128xf32>
    %160 = vector.broadcast %157 : vector<1x128xf32> to vector<8x128xf32>
    %161 = arith.addf %159, %160 : vector<8x128xf32>
    %cst_74 = arith.constant 0.000000e+00 : f32
    %162 = vector.broadcast %cst_74 : f32 to vector<8x128xf32>
    %163 = arith.maximumf %161, %162 : vector<8x128xf32>
    %164 = vector.broadcast %158 : f32 to vector<8x128xf32>
    %165 = arith.mulf %164, %163 : vector<8x128xf32>
    %166 = arith.addf %155, %165 : vector<8x128xf32>
    %c0_75 = arith.constant 0 : index
    %c15 = arith.constant 15 : index
    %167 = vector.load %arg2[%c0_75, %c15] : memref<8x32xf32, #tpu.memory_space<vmem>>, vector<8x1xf32>
    %c15_76 = arith.constant 15 : index
    %c0_77 = arith.constant 0 : index
    %168 = vector.load %arg3[%c15_76, %c0_77] : memref<32x128xf32, #tpu.memory_space<vmem>>, vector<1x128xf32>
    %c15_78 = arith.constant 15 : index
    %169 = memref.load %arg4[%c15_78] : memref<32xf32, #tpu.memory_space<smem>>
    %170 = vector.broadcast %167 : vector<8x1xf32> to vector<8x128xf32>
    %171 = vector.broadcast %168 : vector<1x128xf32> to vector<8x128xf32>
    %172 = arith.addf %170, %171 : vector<8x128xf32>
    %cst_79 = arith.constant 0.000000e+00 : f32
    %173 = vector.broadcast %cst_79 : f32 to vector<8x128xf32>
    %174 = arith.maximumf %172, %173 : vector<8x128xf32>
    %175 = vector.broadcast %169 : f32 to vector<8x128xf32>
    %176 = arith.mulf %175, %174 : vector<8x128xf32>
    %177 = arith.addf %166, %176 : vector<8x128xf32>
    %c0_80 = arith.constant 0 : index
    %c16 = arith.constant 16 : index
    %178 = vector.load %arg2[%c0_80, %c16] : memref<8x32xf32, #tpu.memory_space<vmem>>, vector<8x1xf32>
    %c16_81 = arith.constant 16 : index
    %c0_82 = arith.constant 0 : index
    %179 = vector.load %arg3[%c16_81, %c0_82] : memref<32x128xf32, #tpu.memory_space<vmem>>, vector<1x128xf32>
    %c16_83 = arith.constant 16 : index
    %180 = memref.load %arg4[%c16_83] : memref<32xf32, #tpu.memory_space<smem>>
    %181 = vector.broadcast %178 : vector<8x1xf32> to vector<8x128xf32>
    %182 = vector.broadcast %179 : vector<1x128xf32> to vector<8x128xf32>
    %183 = arith.addf %181, %182 : vector<8x128xf32>
    %cst_84 = arith.constant 0.000000e+00 : f32
    %184 = vector.broadcast %cst_84 : f32 to vector<8x128xf32>
    %185 = arith.maximumf %183, %184 : vector<8x128xf32>
    %186 = vector.broadcast %180 : f32 to vector<8x128xf32>
    %187 = arith.mulf %186, %185 : vector<8x128xf32>
    %188 = arith.addf %177, %187 : vector<8x128xf32>
    %c0_85 = arith.constant 0 : index
    %c17 = arith.constant 17 : index
    %189 = vector.load %arg2[%c0_85, %c17] : memref<8x32xf32, #tpu.memory_space<vmem>>, vector<8x1xf32>
    %c17_86 = arith.constant 17 : index
    %c0_87 = arith.constant 0 : index
    %190 = vector.load %arg3[%c17_86, %c0_87] : memref<32x128xf32, #tpu.memory_space<vmem>>, vector<1x128xf32>
    %c17_88 = arith.constant 17 : index
    %191 = memref.load %arg4[%c17_88] : memref<32xf32, #tpu.memory_space<smem>>
    %192 = vector.broadcast %189 : vector<8x1xf32> to vector<8x128xf32>
    %193 = vector.broadcast %190 : vector<1x128xf32> to vector<8x128xf32>
    %194 = arith.addf %192, %193 : vector<8x128xf32>
    %cst_89 = arith.constant 0.000000e+00 : f32
    %195 = vector.broadcast %cst_89 : f32 to vector<8x128xf32>
    %196 = arith.maximumf %194, %195 : vector<8x128xf32>
    %197 = vector.broadcast %191 : f32 to vector<8x128xf32>
    %198 = arith.mulf %197, %196 : vector<8x128xf32>
    %199 = arith.addf %188, %198 : vector<8x128xf32>
    %c0_90 = arith.constant 0 : index
    %c18 = arith.constant 18 : index
    %200 = vector.load %arg2[%c0_90, %c18] : memref<8x32xf32, #tpu.memory_space<vmem>>, vector<8x1xf32>
    %c18_91 = arith.constant 18 : index
    %c0_92 = arith.constant 0 : index
    %201 = vector.load %arg3[%c18_91, %c0_92] : memref<32x128xf32, #tpu.memory_space<vmem>>, vector<1x128xf32>
    %c18_93 = arith.constant 18 : index
    %202 = memref.load %arg4[%c18_93] : memref<32xf32, #tpu.memory_space<smem>>
    %203 = vector.broadcast %200 : vector<8x1xf32> to vector<8x128xf32>
    %204 = vector.broadcast %201 : vector<1x128xf32> to vector<8x128xf32>
    %205 = arith.addf %203, %204 : vector<8x128xf32>
    %cst_94 = arith.constant 0.000000e+00 : f32
    %206 = vector.broadcast %cst_94 : f32 to vector<8x128xf32>
    %207 = arith.maximumf %205, %206 : vector<8x128xf32>
    %208 = vector.broadcast %202 : f32 to vector<8x128xf32>
    %209 = arith.mulf %208, %207 : vector<8x128xf32>
    %210 = arith.addf %199, %209 : vector<8x128xf32>
    %c0_95 = arith.constant 0 : index
    %c19 = arith.constant 19 : index
    %211 = vector.load %arg2[%c0_95, %c19] : memref<8x32xf32, #tpu.memory_space<vmem>>, vector<8x1xf32>
    %c19_96 = arith.constant 19 : index
    %c0_97 = arith.constant 0 : index
    %212 = vector.load %arg3[%c19_96, %c0_97] : memref<32x128xf32, #tpu.memory_space<vmem>>, vector<1x128xf32>
    %c19_98 = arith.constant 19 : index
    %213 = memref.load %arg4[%c19_98] : memref<32xf32, #tpu.memory_space<smem>>
    %214 = vector.broadcast %211 : vector<8x1xf32> to vector<8x128xf32>
    %215 = vector.broadcast %212 : vector<1x128xf32> to vector<8x128xf32>
    %216 = arith.addf %214, %215 : vector<8x128xf32>
    %cst_99 = arith.constant 0.000000e+00 : f32
    %217 = vector.broadcast %cst_99 : f32 to vector<8x128xf32>
    %218 = arith.maximumf %216, %217 : vector<8x128xf32>
    %219 = vector.broadcast %213 : f32 to vector<8x128xf32>
    %220 = arith.mulf %219, %218 : vector<8x128xf32>
    %221 = arith.addf %210, %220 : vector<8x128xf32>
    %c0_100 = arith.constant 0 : index
    %c20 = arith.constant 20 : index
    %222 = vector.load %arg2[%c0_100, %c20] : memref<8x32xf32, #tpu.memory_space<vmem>>, vector<8x1xf32>
    %c20_101 = arith.constant 20 : index
    %c0_102 = arith.constant 0 : index
    %223 = vector.load %arg3[%c20_101, %c0_102] : memref<32x128xf32, #tpu.memory_space<vmem>>, vector<1x128xf32>
    %c20_103 = arith.constant 20 : index
    %224 = memref.load %arg4[%c20_103] : memref<32xf32, #tpu.memory_space<smem>>
    %225 = vector.broadcast %222 : vector<8x1xf32> to vector<8x128xf32>
    %226 = vector.broadcast %223 : vector<1x128xf32> to vector<8x128xf32>
    %227 = arith.addf %225, %226 : vector<8x128xf32>
    %cst_104 = arith.constant 0.000000e+00 : f32
    %228 = vector.broadcast %cst_104 : f32 to vector<8x128xf32>
    %229 = arith.maximumf %227, %228 : vector<8x128xf32>
    %230 = vector.broadcast %224 : f32 to vector<8x128xf32>
    %231 = arith.mulf %230, %229 : vector<8x128xf32>
    %232 = arith.addf %221, %231 : vector<8x128xf32>
    %c0_105 = arith.constant 0 : index
    %c21 = arith.constant 21 : index
    %233 = vector.load %arg2[%c0_105, %c21] : memref<8x32xf32, #tpu.memory_space<vmem>>, vector<8x1xf32>
    %c21_106 = arith.constant 21 : index
    %c0_107 = arith.constant 0 : index
    %234 = vector.load %arg3[%c21_106, %c0_107] : memref<32x128xf32, #tpu.memory_space<vmem>>, vector<1x128xf32>
    %c21_108 = arith.constant 21 : index
    %235 = memref.load %arg4[%c21_108] : memref<32xf32, #tpu.memory_space<smem>>
    %236 = vector.broadcast %233 : vector<8x1xf32> to vector<8x128xf32>
    %237 = vector.broadcast %234 : vector<1x128xf32> to vector<8x128xf32>
    %238 = arith.addf %236, %237 : vector<8x128xf32>
    %cst_109 = arith.constant 0.000000e+00 : f32
    %239 = vector.broadcast %cst_109 : f32 to vector<8x128xf32>
    %240 = arith.maximumf %238, %239 : vector<8x128xf32>
    %241 = vector.broadcast %235 : f32 to vector<8x128xf32>
    %242 = arith.mulf %241, %240 : vector<8x128xf32>
    %243 = arith.addf %232, %242 : vector<8x128xf32>
    %c0_110 = arith.constant 0 : index
    %c22 = arith.constant 22 : index
    %244 = vector.load %arg2[%c0_110, %c22] : memref<8x32xf32, #tpu.memory_space<vmem>>, vector<8x1xf32>
    %c22_111 = arith.constant 22 : index
    %c0_112 = arith.constant 0 : index
    %245 = vector.load %arg3[%c22_111, %c0_112] : memref<32x128xf32, #tpu.memory_space<vmem>>, vector<1x128xf32>
    %c22_113 = arith.constant 22 : index
    %246 = memref.load %arg4[%c22_113] : memref<32xf32, #tpu.memory_space<smem>>
    %247 = vector.broadcast %244 : vector<8x1xf32> to vector<8x128xf32>
    %248 = vector.broadcast %245 : vector<1x128xf32> to vector<8x128xf32>
    %249 = arith.addf %247, %248 : vector<8x128xf32>
    %cst_114 = arith.constant 0.000000e+00 : f32
    %250 = vector.broadcast %cst_114 : f32 to vector<8x128xf32>
    %251 = arith.maximumf %249, %250 : vector<8x128xf32>
    %252 = vector.broadcast %246 : f32 to vector<8x128xf32>
    %253 = arith.mulf %252, %251 : vector<8x128xf32>
    %254 = arith.addf %243, %253 : vector<8x128xf32>
    %c0_115 = arith.constant 0 : index
    %c23 = arith.constant 23 : index
    %255 = vector.load %arg2[%c0_115, %c23] : memref<8x32xf32, #tpu.memory_space<vmem>>, vector<8x1xf32>
    %c23_116 = arith.constant 23 : index
    %c0_117 = arith.constant 0 : index
    %256 = vector.load %arg3[%c23_116, %c0_117] : memref<32x128xf32, #tpu.memory_space<vmem>>, vector<1x128xf32>
    %c23_118 = arith.constant 23 : index
    %257 = memref.load %arg4[%c23_118] : memref<32xf32, #tpu.memory_space<smem>>
    %258 = vector.broadcast %255 : vector<8x1xf32> to vector<8x128xf32>
    %259 = vector.broadcast %256 : vector<1x128xf32> to vector<8x128xf32>
    %260 = arith.addf %258, %259 : vector<8x128xf32>
    %cst_119 = arith.constant 0.000000e+00 : f32
    %261 = vector.broadcast %cst_119 : f32 to vector<8x128xf32>
    %262 = arith.maximumf %260, %261 : vector<8x128xf32>
    %263 = vector.broadcast %257 : f32 to vector<8x128xf32>
    %264 = arith.mulf %263, %262 : vector<8x128xf32>
    %265 = arith.addf %254, %264 : vector<8x128xf32>
    %c0_120 = arith.constant 0 : index
    %c24 = arith.constant 24 : index
    %266 = vector.load %arg2[%c0_120, %c24] : memref<8x32xf32, #tpu.memory_space<vmem>>, vector<8x1xf32>
    %c24_121 = arith.constant 24 : index
    %c0_122 = arith.constant 0 : index
    %267 = vector.load %arg3[%c24_121, %c0_122] : memref<32x128xf32, #tpu.memory_space<vmem>>, vector<1x128xf32>
    %c24_123 = arith.constant 24 : index
    %268 = memref.load %arg4[%c24_123] : memref<32xf32, #tpu.memory_space<smem>>
    %269 = vector.broadcast %266 : vector<8x1xf32> to vector<8x128xf32>
    %270 = vector.broadcast %267 : vector<1x128xf32> to vector<8x128xf32>
    %271 = arith.addf %269, %270 : vector<8x128xf32>
    %cst_124 = arith.constant 0.000000e+00 : f32
    %272 = vector.broadcast %cst_124 : f32 to vector<8x128xf32>
    %273 = arith.maximumf %271, %272 : vector<8x128xf32>
    %274 = vector.broadcast %268 : f32 to vector<8x128xf32>
    %275 = arith.mulf %274, %273 : vector<8x128xf32>
    %276 = arith.addf %265, %275 : vector<8x128xf32>
    %c0_125 = arith.constant 0 : index
    %c25 = arith.constant 25 : index
    %277 = vector.load %arg2[%c0_125, %c25] : memref<8x32xf32, #tpu.memory_space<vmem>>, vector<8x1xf32>
    %c25_126 = arith.constant 25 : index
    %c0_127 = arith.constant 0 : index
    %278 = vector.load %arg3[%c25_126, %c0_127] : memref<32x128xf32, #tpu.memory_space<vmem>>, vector<1x128xf32>
    %c25_128 = arith.constant 25 : index
    %279 = memref.load %arg4[%c25_128] : memref<32xf32, #tpu.memory_space<smem>>
    %280 = vector.broadcast %277 : vector<8x1xf32> to vector<8x128xf32>
    %281 = vector.broadcast %278 : vector<1x128xf32> to vector<8x128xf32>
    %282 = arith.addf %280, %281 : vector<8x128xf32>
    %cst_129 = arith.constant 0.000000e+00 : f32
    %283 = vector.broadcast %cst_129 : f32 to vector<8x128xf32>
    %284 = arith.maximumf %282, %283 : vector<8x128xf32>
    %285 = vector.broadcast %279 : f32 to vector<8x128xf32>
    %286 = arith.mulf %285, %284 : vector<8x128xf32>
    %287 = arith.addf %276, %286 : vector<8x128xf32>
    %c0_130 = arith.constant 0 : index
    %c26 = arith.constant 26 : index
    %288 = vector.load %arg2[%c0_130, %c26] : memref<8x32xf32, #tpu.memory_space<vmem>>, vector<8x1xf32>
    %c26_131 = arith.constant 26 : index
    %c0_132 = arith.constant 0 : index
    %289 = vector.load %arg3[%c26_131, %c0_132] : memref<32x128xf32, #tpu.memory_space<vmem>>, vector<1x128xf32>
    %c26_133 = arith.constant 26 : index
    %290 = memref.load %arg4[%c26_133] : memref<32xf32, #tpu.memory_space<smem>>
    %291 = vector.broadcast %288 : vector<8x1xf32> to vector<8x128xf32>
    %292 = vector.broadcast %289 : vector<1x128xf32> to vector<8x128xf32>
    %293 = arith.addf %291, %292 : vector<8x128xf32>
    %cst_134 = arith.constant 0.000000e+00 : f32
    %294 = vector.broadcast %cst_134 : f32 to vector<8x128xf32>
    %295 = arith.maximumf %293, %294 : vector<8x128xf32>
    %296 = vector.broadcast %290 : f32 to vector<8x128xf32>
    %297 = arith.mulf %296, %295 : vector<8x128xf32>
    %298 = arith.addf %287, %297 : vector<8x128xf32>
    %c0_135 = arith.constant 0 : index
    %c27 = arith.constant 27 : index
    %299 = vector.load %arg2[%c0_135, %c27] : memref<8x32xf32, #tpu.memory_space<vmem>>, vector<8x1xf32>
    %c27_136 = arith.constant 27 : index
    %c0_137 = arith.constant 0 : index
    %300 = vector.load %arg3[%c27_136, %c0_137] : memref<32x128xf32, #tpu.memory_space<vmem>>, vector<1x128xf32>
    %c27_138 = arith.constant 27 : index
    %301 = memref.load %arg4[%c27_138] : memref<32xf32, #tpu.memory_space<smem>>
    %302 = vector.broadcast %299 : vector<8x1xf32> to vector<8x128xf32>
    %303 = vector.broadcast %300 : vector<1x128xf32> to vector<8x128xf32>
    %304 = arith.addf %302, %303 : vector<8x128xf32>
    %cst_139 = arith.constant 0.000000e+00 : f32
    %305 = vector.broadcast %cst_139 : f32 to vector<8x128xf32>
    %306 = arith.maximumf %304, %305 : vector<8x128xf32>
    %307 = vector.broadcast %301 : f32 to vector<8x128xf32>
    %308 = arith.mulf %307, %306 : vector<8x128xf32>
    %309 = arith.addf %298, %308 : vector<8x128xf32>
    %c0_140 = arith.constant 0 : index
    %c28 = arith.constant 28 : index
    %310 = vector.load %arg2[%c0_140, %c28] : memref<8x32xf32, #tpu.memory_space<vmem>>, vector<8x1xf32>
    %c28_141 = arith.constant 28 : index
    %c0_142 = arith.constant 0 : index
    %311 = vector.load %arg3[%c28_141, %c0_142] : memref<32x128xf32, #tpu.memory_space<vmem>>, vector<1x128xf32>
    %c28_143 = arith.constant 28 : index
    %312 = memref.load %arg4[%c28_143] : memref<32xf32, #tpu.memory_space<smem>>
    %313 = vector.broadcast %310 : vector<8x1xf32> to vector<8x128xf32>
    %314 = vector.broadcast %311 : vector<1x128xf32> to vector<8x128xf32>
    %315 = arith.addf %313, %314 : vector<8x128xf32>
    %cst_144 = arith.constant 0.000000e+00 : f32
    %316 = vector.broadcast %cst_144 : f32 to vector<8x128xf32>
    %317 = arith.maximumf %315, %316 : vector<8x128xf32>
    %318 = vector.broadcast %312 : f32 to vector<8x128xf32>
    %319 = arith.mulf %318, %317 : vector<8x128xf32>
    %320 = arith.addf %309, %319 : vector<8x128xf32>
    %c0_145 = arith.constant 0 : index
    %c29 = arith.constant 29 : index
    %321 = vector.load %arg2[%c0_145, %c29] : memref<8x32xf32, #tpu.memory_space<vmem>>, vector<8x1xf32>
    %c29_146 = arith.constant 29 : index
    %c0_147 = arith.constant 0 : index
    %322 = vector.load %arg3[%c29_146, %c0_147] : memref<32x128xf32, #tpu.memory_space<vmem>>, vector<1x128xf32>
    %c29_148 = arith.constant 29 : index
    %323 = memref.load %arg4[%c29_148] : memref<32xf32, #tpu.memory_space<smem>>
    %324 = vector.broadcast %321 : vector<8x1xf32> to vector<8x128xf32>
    %325 = vector.broadcast %322 : vector<1x128xf32> to vector<8x128xf32>
    %326 = arith.addf %324, %325 : vector<8x128xf32>
    %cst_149 = arith.constant 0.000000e+00 : f32
    %327 = vector.broadcast %cst_149 : f32 to vector<8x128xf32>
    %328 = arith.maximumf %326, %327 : vector<8x128xf32>
    %329 = vector.broadcast %323 : f32 to vector<8x128xf32>
    %330 = arith.mulf %329, %328 : vector<8x128xf32>
    %331 = arith.addf %320, %330 : vector<8x128xf32>
    %c0_150 = arith.constant 0 : index
    %c30 = arith.constant 30 : index
    %332 = vector.load %arg2[%c0_150, %c30] : memref<8x32xf32, #tpu.memory_space<vmem>>, vector<8x1xf32>
    %c30_151 = arith.constant 30 : index
    %c0_152 = arith.constant 0 : index
    %333 = vector.load %arg3[%c30_151, %c0_152] : memref<32x128xf32, #tpu.memory_space<vmem>>, vector<1x128xf32>
    %c30_153 = arith.constant 30 : index
    %334 = memref.load %arg4[%c30_153] : memref<32xf32, #tpu.memory_space<smem>>
    %335 = vector.broadcast %332 : vector<8x1xf32> to vector<8x128xf32>
    %336 = vector.broadcast %333 : vector<1x128xf32> to vector<8x128xf32>
    %337 = arith.addf %335, %336 : vector<8x128xf32>
    %cst_154 = arith.constant 0.000000e+00 : f32
    %338 = vector.broadcast %cst_154 : f32 to vector<8x128xf32>
    %339 = arith.maximumf %337, %338 : vector<8x128xf32>
    %340 = vector.broadcast %334 : f32 to vector<8x128xf32>
    %341 = arith.mulf %340, %339 : vector<8x128xf32>
    %342 = arith.addf %331, %341 : vector<8x128xf32>
    %c0_155 = arith.constant 0 : index
    %c31 = arith.constant 31 : index
    %343 = vector.load %arg2[%c0_155, %c31] : memref<8x32xf32, #tpu.memory_space<vmem>>, vector<8x1xf32>
    %c31_156 = arith.constant 31 : index
    %c0_157 = arith.constant 0 : index
    %344 = vector.load %arg3[%c31_156, %c0_157] : memref<32x128xf32, #tpu.memory_space<vmem>>, vector<1x128xf32>
    %c31_158 = arith.constant 31 : index
    %345 = memref.load %arg4[%c31_158] : memref<32xf32, #tpu.memory_space<smem>>
    %346 = vector.broadcast %343 : vector<8x1xf32> to vector<8x128xf32>
    %347 = vector.broadcast %344 : vector<1x128xf32> to vector<8x128xf32>
    %348 = arith.addf %346, %347 : vector<8x128xf32>
    %cst_159 = arith.constant 0.000000e+00 : f32
    %349 = vector.broadcast %cst_159 : f32 to vector<8x128xf32>
    %350 = arith.maximumf %348, %349 : vector<8x128xf32>
    %351 = vector.broadcast %345 : f32 to vector<8x128xf32>
    %352 = arith.mulf %351, %350 : vector<8x128xf32>
    %353 = arith.addf %342, %352 : vector<8x128xf32>
    %c0_160 = arith.constant 0 : index
    %c0_161 = arith.constant 0 : index
    %354 = vector.load %arg6[%c0_160, %c0_161] : memref<8x128xf32, #tpu.memory_space<vmem>>, vector<8x128xf32>
    tpu.vector_store %arg6[%c0_160, %c0_161], %353 {strides = array<i32>} : memref<8x128xf32, #tpu.memory_space<vmem>>, vector<8x128xf32>,
    return
  }
  func.func @transform_0(%arg0: i32, %arg1: i32) -> (i32, i32) {
    %c0_i32 = arith.constant 0 : i32
    %c0_i32_0 = arith.constant 0 : i32
    return %arg0, %c0_i32 : i32, i32
  }
  func.func @transform_1(%arg0: i32, %arg1: i32) -> (i32, i32) {
    %c0_i32 = arith.constant 0 : i32
    %c0_i32_0 = arith.constant 0 : i32
    return %c0_i32, %arg1 : i32, i32
  }
  func.func @transform_2(%arg0: i32, %arg1: i32) -> i32 {
    %c0_i32 = arith.constant 0 : i32
    %c0_i32_0 = arith.constant 0 : i32
    return %c0_i32 : i32
  }
  func.func @transform_3(%arg0: i32, %arg1: i32) -> i32 {
    %c0_i32 = arith.constant 0 : i32
    %c0_i32_0 = arith.constant 0 : i32
    return %c0_i32 : i32
  }
  func.func @transform_4(%arg0: i32, %arg1: i32) -> (i32, i32) {
    %c0_i32 = arith.constant 0 : i32
    return %arg0, %arg1 : i32, i32
  }
}

</mosaic_0001>

<llo_original>
// kernel: interaction_predictor.1
$region0: #{interaction_predictor.1}
  #allocation0 [shape = 'u32[]', space=smem, size = 0x4, offset = 0x4, fixed_abs, tag = 'smem constant byte address 0x4 - core index']
  #allocation1 [shape = 'u32[144,128]{1,0:T(1,128)}', space=vmem, size = 0x12000, scoped, tag = 'internal scratch']
  #allocation2 [shape = 'f32[1]{0:T(128)S(6)}', space=smem, size = 0x200, scoped, tag = 'scoped memory for interaction_predictor.1']
  %s0 = inlined_call_operand.vmem [shape: f32[8,32], index: 0, kind: input, shape index: {}]
  %s1 = inlined_call_operand.vmem [shape: f32[32,128], index: 1, kind: input, shape index: {}]
  %s2 = inlined_call_operand.vmem [shape: f32[32], index: 2, kind: input, shape index: {}]
  %s3 = inlined_call_operand.<no memory space> [shape: f32[1], index: 3, kind: input, shape index: {}]
  %s4 = inlined_call_operand.hbm [shape: f32[8,128], index: 4, kind: output, shape index: {}]
  %s5 = sld [smem:[#allocation0]]
  $region30: #{interaction_predictor.1} parent=0
    _
  %s7 = ssub.s32 1, %s5
  %s8 = scalar_select 0, %s7, %s5
  %9 = sst [smem:[#allocation2]] %s3
  $region1: #{interaction_predictor.1} parent=0
    #allocation3 [shape = 'u8[512]{0}', space=smem, size = 0x200, scoped, tag = 'input window, operand 2, single buffered']
    #allocation4 [shape = 's32[1]{0}', space=sflag, size = 0x4, scoped, tag = 'scoped memory for interaction_predictor.1']
    #allocation5 [shape = 's32[1]{0}', space=sflag, size = 0x4, scoped, tag = 'scoped memory for interaction_predictor.1']
    #allocation6 [shape = 'u8[4096]{0}', space=vmem, size = 0x1000, scoped, tag = 'output window, operand 0, single buffered']
    %10 = vsyncpa [#allocation5], 0
    %11 = vsyncpa [#allocation4], 0
    // Predicated region
    $region2: #{interaction_predictor.1} parent=1 // pred_check
      _
    $region3: #{interaction_predictor.1} parent=1 // pred_check_branch
      %13 = sbr.rel (0) target = $region5
    $region4: #{interaction_predictor.1} parent=1 // pred_region
      _
    $region5: #{interaction_predictor.1} parent=1 // pred_fallthru
      _
    // Predicated region
    $region6: #{interaction_predictor.1} parent=1 // pred_check
      _
    $region7: #{interaction_predictor.1} parent=1 // pred_check_branch
      %15 = sbr.rel (0) target = $region9
    $region8: #{interaction_predictor.1} parent=1 // pred_region
      _
    $region9: #{interaction_predictor.1} parent=1 // pred_fallthru
      _
    // Predicated region
    $region10: #{interaction_predictor.1} parent=1 // pred_check
      _
    $region11: #{interaction_predictor.1} parent=1 // pred_check_branch
      %17 = sbr.rel (0) target = $region13
    $region12: #{interaction_predictor.1} parent=1 // pred_region
      %s19 = ssub.s32 16, 16
      %20 = vsyncadd [#allocation5], %s19
      %s22 = sshll.u32 %s2, 4
      %s23 = int_to_ptr.vmem [resolvable:$true] %s22
      %25 = dma.vmem_to_smem %s23, 16, [#allocation3], [#allocation5]
    $region13: #{interaction_predictor.1} parent=1 // pred_fallthru
      _
    // Predicated region
    $region14: #{interaction_predictor.1} parent=1 // pred_check
      _
    $region15: #{interaction_predictor.1} parent=1 // pred_check_branch
      %27 = sbr.rel (0) target = $region17
    $region16: #{interaction_predictor.1} parent=1 // pred_region
      _
    $region17: #{interaction_predictor.1} parent=1 // pred_fallthru
      _
    // Predicated region
    $region18: #{interaction_predictor.1} parent=1 // pred_check
      _
    $region19: #{interaction_predictor.1} parent=1 // pred_check_branch
      %29 = sbr.rel (0) target = $region21
    $region20: #{interaction_predictor.1} parent=1 // pred_region
      %30 = dma.done [#allocation5], 16
    $region21: #{interaction_predictor.1} parent=1 // pred_fallthru
      _
    %31 = sfence
    %s32 = sld [smem:[#allocation2]]
    %v33 = vstv %s32
    %v34 = vld [vmem:[%s0] sm:$0xff]
    %v35 = vld [vmem:[%s1] sm:$0x1]
    %s36 = sld [smem:[#allocation3]]
    %38 = vset.pattern.permute.xlu0 0
    %39 = vperm.xlu0 %38, %v34
    %v40 = vpop.permute.xlu0 %39
    %v42 = vlaneseq
    %v43 = vshrl.u32 %v42, 7
    %v44 = vsub.s32 0, %v43
    %v45 = vrot.slane %v35, %v44
    %v46 = vadd.f32 %v40, %v45
    %v47 = vmax.f32 %v46, 0.0
    %v48 = vstv %s36
    %v49 = vmul.f32 %v48, %v47
    %v50 = vadd.f32 %v33, %v49
    %v51 = vld [vmem:[%s1 + $0x1] sm:$0x1]
    %s52 = sld [smem:[#allocation3 + $0x1]]
    %53 = vset.pattern.permute.xlu0 1
    %54 = vperm.xlu0 %53, %v34
    %v55 = vpop.permute.xlu0 %54
    %v57 = vlaneseq
    %v58 = vshrl.u32 %v57, 7
    %v59 = vsub.s32 0, %v58
    %v60 = vrot.slane %v51, %v59
    %v61 = vadd.f32 %v55, %v60
    %v62 = vmax.f32 %v61, 0.0
    %v63 = vstv %s52
    %v64 = vmul.f32 %v63, %v62
    %v65 = vadd.f32 %v50, %v64
    %v66 = vld [vmem:[%s1 + $0x2] sm:$0x1]
    %s67 = sld [smem:[#allocation3 + $0x2]]
    %68 = vset.pattern.permute.xlu0 2
    %69 = vperm.xlu0 %68, %v34
    %v70 = vpop.permute.xlu0 %69
    %v72 = vlaneseq
    %v73 = vshrl.u32 %v72, 7
    %v74 = vsub.s32 0, %v73
    %v75 = vrot.slane %v66, %v74
    %v76 = vadd.f32 %v70, %v75
    %v77 = vmax.f32 %v76, 0.0
    %v78 = vstv %s67
    %v79 = vmul.f32 %v78, %v77
    %v80 = vadd.f32 %v65, %v79
    %v81 = vld [vmem:[%s1 + $0x3] sm:$0x1]
    %s82 = sld [smem:[#allocation3 + $0x3]]
    %83 = vset.pattern.permute.xlu0 3
    %84 = vperm.xlu0 %83, %v34
    %v85 = vpop.permute.xlu0 %84
    %v87 = vlaneseq
    %v88 = vshrl.u32 %v87, 7
    %v89 = vsub.s32 0, %v88
    %v90 = vrot.slane %v81, %v89
    %v91 = vadd.f32 %v85, %v90
    %v92 = vmax.f32 %v91, 0.0
    %v93 = vstv %s82
    %v94 = vmul.f32 %v93, %v92
    %v95 = vadd.f32 %v80, %v94
    %v96 = vld [vmem:[%s1 + $0x4] sm:$0x1]
    %s97 = sld [smem:[#allocation3 + $0x4]]
    %98 = vset.pattern.permute.xlu0 4
    %99 = vperm.xlu0 %98, %v34
    %v100 = vpop.permute.xlu0 %99
    %v102 = vlaneseq
    %v103 = vshrl.u32 %v102, 7
    %v104 = vsub.s32 0, %v103
    %v105 = vrot.slane %v96, %v104
    %v106 = vadd.f32 %v100, %v105
    %v107 = vmax.f32 %v106, 0.0
    %v108 = vstv %s97
    %v109 = vmul.f32 %v108, %v107
    %v110 = vadd.f32 %v95, %v109
    %v111 = vld [vmem:[%s1 + $0x5] sm:$0x1]
    %s112 = sld [smem:[#allocation3 + $0x5]]
    %113 = vset.pattern.permute.xlu0 5
    %114 = vperm.xlu0 %113, %v34
    %v115 = vpop.permute.xlu0 %114
    %v117 = vlaneseq
    %v118 = vshrl.u32 %v117, 7
    %v119 = vsub.s32 0, %v118
    %v120 = vrot.slane %v111, %v119
    %v121 = vadd.f32 %v115, %v120
    %v122 = vmax.f32 %v121, 0.0
    %v123 = vstv %s112
    %v124 = vmul.f32 %v123, %v122
    %v125 = vadd.f32 %v110, %v124
    %v126 = vld [vmem:[%s1 + $0x6] sm:$0x1]
    %s127 = sld [smem:[#allocation3 + $0x6]]
    %128 = vset.pattern.permute.xlu0 6
    %129 = vperm.xlu0 %128, %v34
    %v130 = vpop.permute.xlu0 %129
    %v132 = vlaneseq
    %v133 = vshrl.u32 %v132, 7
    %v134 = vsub.s32 0, %v133
    %v135 = vrot.slane %v126, %v134
    %v136 = vadd.f32 %v130, %v135
    %v137 = vmax.f32 %v136, 0.0
    %v138 = vstv %s127
    %v139 = vmul.f32 %v138, %v137
    %v140 = vadd.f32 %v125, %v139
    %v141 = vld [vmem:[%s1 + $0x7] sm:$0x1]
    %s142 = sld [smem:[#allocation3 + $0x7]]
    %143 = vset.pattern.permute.xlu0 7
    %144 = vperm.xlu0 %143, %v34
    %v145 = vpop.permute.xlu0 %144
    %v147 = vlaneseq
    %v148 = vshrl.u32 %v147, 7
    %v149 = vsub.s32 0, %v148
    %v150 = vrot.slane %v141, %v149
    %v151 = vadd.f32 %v145, %v150
    %v152 = vmax.f32 %v151, 0.0
    %v153 = vstv %s142
    %v154 = vmul.f32 %v153, %v152
    %v155 = vadd.f32 %v140, %v154
    %v156 = vld [vmem:[%s1 + $0x8] sm:$0x1]
    %s157 = sld [smem:[#allocation3 + $0x8]]
    %158 = vset.pattern.permute.xlu0 8
    %159 = vperm.xlu0 %158, %v34
    %v160 = vpop.permute.xlu0 %159
    %v162 = vlaneseq
    %v163 = vshrl.u32 %v162, 7
    %v164 = vsub.s32 0, %v163
    %v165 = vrot.slane %v156, %v164
    %v166 = vadd.f32 %v160, %v165
    %v167 = vmax.f32 %v166, 0.0
    %v168 = vstv %s157
    %v169 = vmul.f32 %v168, %v167
    %v170 = vadd.f32 %v155, %v169
    %v171 = vld [vmem:[%s1 + $0x9] sm:$0x1]
    %s172 = sld [smem:[#allocation3 + $0x9]]
    %173 = vset.pattern.permute.xlu0 9
    %174 = vperm.xlu0 %173, %v34
    %v175 = vpop.permute.xlu0 %174
    %v177 = vlaneseq
    %v178 = vshrl.u32 %v177, 7
    %v179 = vsub.s32 0, %v178
    %v180 = vrot.slane %v171, %v179
    %v181 = vadd.f32 %v175, %v180
    %v182 = vmax.f32 %v181, 0.0
    %v183 = vstv %s172
    %v184 = vmul.f32 %v183, %v182
    %v185 = vadd.f32 %v170, %v184
    %v186 = vld [vmem:[%s1 + $0xa] sm:$0x1]
    %s187 = sld [smem:[#allocation3 + $0xa]]
    %188 = vset.pattern.permute.xlu0 10
    %189 = vperm.xlu0 %188, %v34
    %v190 = vpop.permute.xlu0 %189
    %v192 = vlaneseq
    %v193 = vshrl.u32 %v192, 7
    %v194 = vsub.s32 0, %v193
    %v195 = vrot.slane %v186, %v194
    %v196 = vadd.f32 %v190, %v195
    %v197 = vmax.f32 %v196, 0.0
    %v198 = vstv %s187
    %v199 = vmul.f32 %v198, %v197
    %v200 = vadd.f32 %v185, %v199
    %v201 = vld [vmem:[%s1 + $0xb] sm:$0x1]
    %s202 = sld [smem:[#allocation3 + $0xb]]
    %203 = vset.pattern.permute.xlu0 11
    %204 = vperm.xlu0 %203, %v34
    %v205 = vpop.permute.xlu0 %204
    %v207 = vlaneseq
    %v208 = vshrl.u32 %v207, 7
    %v209 = vsub.s32 0, %v208
    %v210 = vrot.slane %v201, %v209
    %v211 = vadd.f32 %v205, %v210
    %v212 = vmax.f32 %v211, 0.0
    %v213 = vstv %s202
    %v214 = vmul.f32 %v213, %v212
    %v215 = vadd.f32 %v200, %v214
    %v216 = vld [vmem:[%s1 + $0xc] sm:$0x1]
    %s217 = sld [smem:[#allocation3 + $0xc]]
    %218 = vset.pattern.permute.xlu0 12
    %219 = vperm.xlu0 %218, %v34
    %v220 = vpop.permute.xlu0 %219
    %v222 = vlaneseq
    %v223 = vshrl.u32 %v222, 7
    %v224 = vsub.s32 0, %v223
    %v225 = vrot.slane %v216, %v224
    %v226 = vadd.f32 %v220, %v225
    %v227 = vmax.f32 %v226, 0.0
    %v228 = vstv %s217
    %v229 = vmul.f32 %v228, %v227
    %v230 = vadd.f32 %v215, %v229
    %v231 = vld [vmem:[%s1 + $0xd] sm:$0x1]
    %s232 = sld [smem:[#allocation3 + $0xd]]
    %233 = vset.pattern.permute.xlu0 13
    %234 = vperm.xlu0 %233, %v34
    %v235 = vpop.permute.xlu0 %234
    %v237 = vlaneseq
    %v238 = vshrl.u32 %v237, 7
    %v239 = vsub.s32 0, %v238
    %v240 = vrot.slane %v231, %v239
    %v241 = vadd.f32 %v235, %v240
    %v242 = vmax.f32 %v241, 0.0
    %v243 = vstv %s232
    %v244 = vmul.f32 %v243, %v242
    %v245 = vadd.f32 %v230, %v244
    %v246 = vld [vmem:[%s1 + $0xe] sm:$0x1]
    %s247 = sld [smem:[#allocation3 + $0xe]]
    %248 = vset.pattern.permute.xlu0 14
    %249 = vperm.xlu0 %248, %v34
    %v250 = vpop.permute.xlu0 %249
    %v252 = vlaneseq
    %v253 = vshrl.u32 %v252, 7
    %v254 = vsub.s32 0, %v253
    %v255 = vrot.slane %v246, %v254
    %v256 = vadd.f32 %v250, %v255
    %v257 = vmax.f32 %v256, 0.0
    %v258 = vstv %s247
    %v259 = vmul.f32 %v258, %v257
    %v260 = vadd.f32 %v245, %v259
    %v261 = vld [vmem:[%s1 + $0xf] sm:$0x1]
    %s262 = sld [smem:[#allocation3 + $0xf]]
    %263 = vset.pattern.permute.xlu0 15
    %264 = vperm.xlu0 %263, %v34
    %v265 = vpop.permute.xlu0 %264
    %v267 = vlaneseq
    %v268 = vshrl.u32 %v267, 7
    %v269 = vsub.s32 0, %v268
    %v270 = vrot.slane %v261, %v269
    %v271 = vadd.f32 %v265, %v270
    %v272 = vmax.f32 %v271, 0.0
    %v273 = vstv %s262
    %v274 = vmul.f32 %v273, %v272
    %v275 = vadd.f32 %v260, %v274
    %v276 = vld [vmem:[%s1 + $0x10] sm:$0x1]
    %s277 = sld [smem:[#allocation3 + $0x10]]
    %278 = vset.pattern.permute.xlu0 16
    %279 = vperm.xlu0 %278, %v34
    %v280 = vpop.permute.xlu0 %279
    %v282 = vlaneseq
    %v283 = vshrl.u32 %v282, 7
    %v284 = vsub.s32 0, %v283
    %v285 = vrot.slane %v276, %v284
    %v286 = vadd.f32 %v280, %v285
    %v287 = vmax.f32 %v286, 0.0
    %v288 = vstv %s277
    %v289 = vmul.f32 %v288, %v287
    %v290 = vadd.f32 %v275, %v289
    %v291 = vld [vmem:[%s1 + $0x11] sm:$0x1]
    %s292 = sld [smem:[#allocation3 + $0x11]]
    %293 = vset.pattern.permute.xlu0 17
    %294 = vperm.xlu0 %293, %v34
    %v295 = vpop.permute.xlu0 %294
    %v297 = vlaneseq
    %v298 = vshrl.u32 %v297, 7
    %v299 = vsub.s32 0, %v298
    %v300 = vrot.slane %v291, %v299
    %v301 = vadd.f32 %v295, %v300
    %v302 = vmax.f32 %v301, 0.0
    %v303 = vstv %s292
    %v304 = vmul.f32 %v303, %v302
    %v305 = vadd.f32 %v290, %v304
    %v306 = vld [vmem:[%s1 + $0x12] sm:$0x1]
    %s307 = sld [smem:[#allocation3 + $0x12]]
    %308 = vset.pattern.permute.xlu0 18
    %309 = vperm.xlu0 %308, %v34
    %v310 = vpop.permute.xlu0 %309
    %v312 = vlaneseq
    %v313 = vshrl.u32 %v312, 7
    %v314 = vsub.s32 0, %v313
    %v315 = vrot.slane %v306, %v314
    %v316 = vadd.f32 %v310, %v315
    %v317 = vmax.f32 %v316, 0.0
    %v318 = vstv %s307
    %v319 = vmul.f32 %v318, %v317
    %v320 = vadd.f32 %v305, %v319
    %v321 = vld [vmem:[%s1 + $0x13] sm:$0x1]
    %s322 = sld [smem:[#allocation3 + $0x13]]
    %323 = vset.pattern.permute.xlu0 19
    %324 = vperm.xlu0 %323, %v34
    %v325 = vpop.permute.xlu0 %324
    %v327 = vlaneseq
    %v328 = vshrl.u32 %v327, 7
    %v329 = vsub.s32 0, %v328
    %v330 = vrot.slane %v321, %v329
    %v331 = vadd.f32 %v325, %v330
    %v332 = vmax.f32 %v331, 0.0
    %v333 = vstv %s322
    %v334 = vmul.f32 %v333, %v332
    %v335 = vadd.f32 %v320, %v334
    %v336 = vld [vmem:[%s1 + $0x14] sm:$0x1]
    %s337 = sld [smem:[#allocation3 + $0x14]]
    %338 = vset.pattern.permute.xlu0 20
    %339 = vperm.xlu0 %338, %v34
    %v340 = vpop.permute.xlu0 %339
    %v342 = vlaneseq
    %v343 = vshrl.u32 %v342, 7
    %v344 = vsub.s32 0, %v343
    %v345 = vrot.slane %v336, %v344
    %v346 = vadd.f32 %v340, %v345
    %v347 = vmax.f32 %v346, 0.0
    %v348 = vstv %s337
    %v349 = vmul.f32 %v348, %v347
    %v350 = vadd.f32 %v335, %v349
    %v351 = vld [vmem:[%s1 + $0x15] sm:$0x1]
    %s352 = sld [smem:[#allocation3 + $0x15]]
    %353 = vset.pattern.permute.xlu0 21
    %354 = vperm.xlu0 %353, %v34
    %v355 = vpop.permute.xlu0 %354
    %v357 = vlaneseq
    %v358 = vshrl.u32 %v357, 7
    %v359 = vsub.s32 0, %v358
    %v360 = vrot.slane %v351, %v359
    %v361 = vadd.f32 %v355, %v360
    %v362 = vmax.f32 %v361, 0.0
    %v363 = vstv %s352
    %v364 = vmul.f32 %v363, %v362
    %v365 = vadd.f32 %v350, %v364
    %v366 = vld [vmem:[%s1 + $0x16] sm:$0x1]
    %s367 = sld [smem:[#allocation3 + $0x16]]
    %368 = vset.pattern.permute.xlu0 22
    %369 = vperm.xlu0 %368, %v34
    %v370 = vpop.permute.xlu0 %369
    %v372 = vlaneseq
    %v373 = vshrl.u32 %v372, 7
    %v374 = vsub.s32 0, %v373
    %v375 = vrot.slane %v366, %v374
    %v376 = vadd.f32 %v370, %v375
    %v377 = vmax.f32 %v376, 0.0
    %v378 = vstv %s367
    %v379 = vmul.f32 %v378, %v377
    %v380 = vadd.f32 %v365, %v379
    %v381 = vld [vmem:[%s1 + $0x17] sm:$0x1]
    %s382 = sld [smem:[#allocation3 + $0x17]]
    %383 = vset.pattern.permute.xlu0 23
    %384 = vperm.xlu0 %383, %v34
    %v385 = vpop.permute.xlu0 %384
    %v387 = vlaneseq
    %v388 = vshrl.u32 %v387, 7
    %v389 = vsub.s32 0, %v388
    %v390 = vrot.slane %v381, %v389
    %v391 = vadd.f32 %v385, %v390
    %v392 = vmax.f32 %v391, 0.0
    %v393 = vstv %s382
    %v394 = vmul.f32 %v393, %v392
    %v395 = vadd.f32 %v380, %v394
    %v396 = vld [vmem:[%s1 + $0x18] sm:$0x1]
    %s397 = sld [smem:[#allocation3 + $0x18]]
    %398 = vset.pattern.permute.xlu0 24
    %399 = vperm.xlu0 %398, %v34
    %v400 = vpop.permute.xlu0 %399
    %v402 = vlaneseq
    %v403 = vshrl.u32 %v402, 7
    %v404 = vsub.s32 0, %v403
    %v405 = vrot.slane %v396, %v404
    %v406 = vadd.f32 %v400, %v405
    %v407 = vmax.f32 %v406, 0.0
    %v408 = vstv %s397
    %v409 = vmul.f32 %v408, %v407
    %v410 = vadd.f32 %v395, %v409
    %v411 = vld [vmem:[%s1 + $0x19] sm:$0x1]
    %s412 = sld [smem:[#allocation3 + $0x19]]
    %413 = vset.pattern.permute.xlu0 25
    %414 = vperm.xlu0 %413, %v34
    %v415 = vpop.permute.xlu0 %414
    %v417 = vlaneseq
    %v418 = vshrl.u32 %v417, 7
    %v419 = vsub.s32 0, %v418
    %v420 = vrot.slane %v411, %v419
    %v421 = vadd.f32 %v415, %v420
    %v422 = vmax.f32 %v421, 0.0
    %v423 = vstv %s412
    %v424 = vmul.f32 %v423, %v422
    %v425 = vadd.f32 %v410, %v424
    %v426 = vld [vmem:[%s1 + $0x1a] sm:$0x1]
    %s427 = sld [smem:[#allocation3 + $0x1a]]
    %428 = vset.pattern.permute.xlu0 26
    %429 = vperm.xlu0 %428, %v34
    %v430 = vpop.permute.xlu0 %429
    %v432 = vlaneseq
    %v433 = vshrl.u32 %v432, 7
    %v434 = vsub.s32 0, %v433
    %v435 = vrot.slane %v426, %v434
    %v436 = vadd.f32 %v430, %v435
    %v437 = vmax.f32 %v436, 0.0
    %v438 = vstv %s427
    %v439 = vmul.f32 %v438, %v437
    %v440 = vadd.f32 %v425, %v439
    %v441 = vld [vmem:[%s1 + $0x1b] sm:$0x1]
    %s442 = sld [smem:[#allocation3 + $0x1b]]
    %443 = vset.pattern.permute.xlu0 27
    %444 = vperm.xlu0 %443, %v34
    %v445 = vpop.permute.xlu0 %444
    %v447 = vlaneseq
    %v448 = vshrl.u32 %v447, 7
    %v449 = vsub.s32 0, %v448
    %v450 = vrot.slane %v441, %v449
    %v451 = vadd.f32 %v445, %v450
    %v452 = vmax.f32 %v451, 0.0
    %v453 = vstv %s442
    %v454 = vmul.f32 %v453, %v452
    %v455 = vadd.f32 %v440, %v454
    %v456 = vld [vmem:[%s1 + $0x1c] sm:$0x1]
    %s457 = sld [smem:[#allocation3 + $0x1c]]
    %458 = vset.pattern.permute.xlu0 28
    %459 = vperm.xlu0 %458, %v34
    %v460 = vpop.permute.xlu0 %459
    %v462 = vlaneseq
    %v463 = vshrl.u32 %v462, 7
    %v464 = vsub.s32 0, %v463
    %v465 = vrot.slane %v456, %v464
    %v466 = vadd.f32 %v460, %v465
    %v467 = vmax.f32 %v466, 0.0
    %v468 = vstv %s457
    %v469 = vmul.f32 %v468, %v467
    %v470 = vadd.f32 %v455, %v469
    %v471 = vld [vmem:[%s1 + $0x1d] sm:$0x1]
    %s472 = sld [smem:[#allocation3 + $0x1d]]
    %473 = vset.pattern.permute.xlu0 29
    %474 = vperm.xlu0 %473, %v34
    %v475 = vpop.permute.xlu0 %474
    %v477 = vlaneseq
    %v478 = vshrl.u32 %v477, 7
    %v479 = vsub.s32 0, %v478
    %v480 = vrot.slane %v471, %v479
    %v481 = vadd.f32 %v475, %v480
    %v482 = vmax.f32 %v481, 0.0
    %v483 = vstv %s472
    %v484 = vmul.f32 %v483, %v482
    %v485 = vadd.f32 %v470, %v484
    %v486 = vld [vmem:[%s1 + $0x1e] sm:$0x1]
    %s487 = sld [smem:[#allocation3 + $0x1e]]
    %488 = vset.pattern.permute.xlu0 30
    %489 = vperm.xlu0 %488, %v34
    %v490 = vpop.permute.xlu0 %489
    %v492 = vlaneseq
    %v493 = vshrl.u32 %v492, 7
    %v494 = vsub.s32 0, %v493
    %v495 = vrot.slane %v486, %v494
    %v496 = vadd.f32 %v490, %v495
    %v497 = vmax.f32 %v496, 0.0
    %v498 = vstv %s487
    %v499 = vmul.f32 %v498, %v497
    %v500 = vadd.f32 %v485, %v499
    %v501 = vld [vmem:[%s1 + $0x1f] sm:$0x1]
    %s502 = sld [smem:[#allocation3 + $0x1f]]
    %503 = vset.pattern.permute.xlu0 31
    %504 = vperm.xlu0 %503, %v34
    %v505 = vpop.permute.xlu0 %504
    %v507 = vlaneseq
    %v508 = vshrl.u32 %v507, 7
    %v509 = vsub.s32 0, %v508
    %v510 = vrot.slane %v501, %v509
    %v511 = vadd.f32 %v505, %v510
    %v512 = vmax.f32 %v511, 0.0
    %v513 = vstv %s502
    %v514 = vmul.f32 %v513, %v512
    %v515 = vadd.f32 %v500, %v514
    %516 = vst [vmem:[#allocation6] sm:$0xff] %v515
    // Predicated region
    $region22: #{interaction_predictor.1} parent=1 // pred_check
      _
    $region23: #{interaction_predictor.1} parent=1 // pred_check_branch
      %518 = sbr.rel (0) target = $region25
    $region24: #{interaction_predictor.1} parent=1 // pred_region
      %s520 = ssub.s32 128, 128
      %521 = vsyncadd [#allocation4], %s520
      %s523 = sshll.u32 [#allocation6], 4
      %s524 = int_to_ptr.vmem [resolvable:$true] %s523
      %526 = dma.vmem_to_hbm [thread:$0]  %s524, 128, %s4, [#allocation4]
    $region25: #{interaction_predictor.1} parent=1 // pred_fallthru
      _
    // Predicated region
    $region26: #{interaction_predictor.1} parent=1 // pred_check
      _
    $region27: #{interaction_predictor.1} parent=1 // pred_check_branch
      %528 = sbr.rel (0) target = $region29
    $region28: #{interaction_predictor.1} parent=1 // pred_region
      %529 = dma.done [#allocation4], 128
    $region29: #{interaction_predictor.1} parent=1 // pred_fallthru
      _
    %530 = vsyncpa [#allocation4], 1
    %531 = vsyncpa [#allocation5], 1

</llo_original>
